<compile_context>
chip_gen: v5e
topology: v5e:2x2
jax: 0.10.0
libtpu: 0.0.40
codegen_flags: <defaults>
</compile_context>

<pallas_src>
import functools
import math

import jax
import jax.numpy as jnp
from jax.experimental import pallas as pl
from jax.experimental.pallas import tpu as pltpu


def _pe2d_add_kernel(x_ref, emb_ref, o_ref):
    # x_ref / o_ref: (C, TS) tile of one batch image (flattened spatial last dim).
    # emb_ref:       (C, TS) matching tile of the precomputed positional embedding (f32).
    o_ref[...] = (x_ref[...].astype(jnp.float32) + emb_ref[...]).astype(o_ref.dtype)


def _choose_spatial_tile(hw, c, itemsize, target_block_bytes=2 << 20):
    """Largest multiple-of-128 tile that divides hw, with ~target bytes per (C, TS) block."""
    if hw % 128 != 0:
        # Full spatial extent is always a legal block shape (lane-dense enough for small hw).
        return hw
    max_elems = max(128, target_block_bytes // max(1, c * itemsize))
    best, t = 128, 128
    while t <= hw:
        if hw % t == 0 and t <= max_elems:
            best = t
        t += 128
    return best


@functools.partial(jax.jit, static_argnums=(1,))
def positional_encoding_2d(x, org_channels):
    B, C, H, W = x.shape
    assert C == org_channels
    assert H == W, "reference module broadcasting requires H == W"

    channels = int(math.ceil(org_channels / 4) * 2)
    F = channels // 2
    inv_freq = 1.0 / (
        10000.0 ** (jnp.arange(0, channels, 2, dtype=jnp.float32) / channels)
    )  # (F,)

    # Per-channel frequency / quadrant (vectorized; no per-channel Python loop).
    c_idx = jnp.arange(C)
    quad = c_idx // F             # 0: sin(i*f), 1: cos(i*f), 2: sin(j*f), 3: cos(j*f)
    freq = inv_freq[c_idx % F]    # (C,)
    is_sin = (quad % 2 == 0)[:, None]
    use_row = (quad < 2)[:, None]

    i = jnp.arange(H, dtype=jnp.float32)   # index along dim 2 of x
    j = jnp.arange(W, dtype=jnp.float32)   # index along dim 3 of x
    ti = freq[:, None] * i[None, :]        # (C, H)
    tj = freq[:, None] * j[None, :]        # (C, W)
    row_tab = jnp.where(use_row, jnp.where(is_sin, jnp.sin(ti), jnp.cos(ti)), 0.0)
    col_tab = jnp.where(use_row, 0.0, jnp.where(is_sin, jnp.sin(tj), jnp.cos(tj)))
    # Full embedding, flattened spatial axis (one broadcast add; zero in-kernel trig).
    emb = (row_tab[:, :, None] + col_tab[:, None, :]).reshape(C, H * W)

    hw = H * W
    itemsize = jnp.dtype(x.dtype).itemsize
    ts = _choose_spatial_tile(hw, C, itemsize)
    num_tiles = hw // ts

    x_flat = x.reshape(B, C, hw)

    out_flat = pl.pallas_call(
        _pe2d_add_kernel,
        out_shape=jax.ShapeDtypeStruct((B, C, hw), x.dtype),
        grid=(num_tiles, B),  # batch innermost -> emb tile stays VMEM-resident across B
        in_specs=[
            pl.BlockSpec((None, C, ts), lambda t, b: (b, 0, t)),  # x tile, batch squeezed
            pl.BlockSpec((C, ts), lambda t, b: (0, t)),           # emb tile (batch-invariant)
        ],
        out_specs=pl.BlockSpec((None, C, ts), lambda t, b: (b, 0, t)),
        input_output_aliases={0: 0},  # write the result in place of x's buffer
        cost_estimate=pl.CostEstimate(
            flops=2 * B * C * hw,
            transcendentals=0,
            bytes_accessed=2 * B * C * hw * itemsize + C * hw * 4,
        ),
        compiler_params=pltpu.CompilerParams(
            dimension_semantics=("parallel", "parallel"),
        ),
    )(x_flat, emb)

    return out_flat.reshape(B, C, H, W)


def _reference(x, org_channels):
    """Pure-JAX transcription of the PyTorch forward for validation."""
    _, _, h, w = x.shape
    channels = int(math.ceil(org_channels / 4) * 2)
    inv_freq = 1.0 / (
        10000.0 ** (jnp.arange(0, channels, 2, dtype=jnp.float32) / channels)
    )
    pos_x, pos_y = jnp.meshgrid(
        jnp.arange(w, dtype=jnp.float32),
        jnp.arange(h, dtype=jnp.float32),
        indexing="ij",
    )
    sin_inp_x = pos_x[..., None] * inv_freq[None, None, :]
    sin_inp_y = pos_y[..., None] * inv_freq[None, None, :]
    emb_x = jnp.concatenate([jnp.sin(sin_inp_x), jnp.cos(sin_inp_x)], axis=-1)[None]
    emb_y = jnp.concatenate([jnp.sin(sin_inp_y), jnp.cos(sin_inp_y)], axis=-1)[None]
    emb = jnp.concatenate([emb_x, emb_y], axis=-1).transpose(0, 3, 1, 2)
    return x + emb[:, :org_channels, :, :]


if __name__ == "__main__":
    key = jax.random.PRNGKey(0)
    B, C, H, W = 2, 4, 16, 16
    x = jax.random.normal(key, (B, C, H, W), dtype=jnp.float32)

    # Compute the reference first (the kernel aliases its input buffer).
    ref = _reference(x, C)

    out = positional_encoding_2d(x, C)
    out = jax.block_until_ready(out)

    assert out.shape == x.shape and out.dtype == x.dtype
    assert jnp.allclose(out, ref, atol=1e-5, rtol=1e-5), "mismatch vs reference"

    print("KERNEL_OK")
</pallas_src>

<mosaic_0001>
module attributes {stable_mosaic.version = 11 : i64} {
  func.func @_pe2d_add_kernel(%arg0: i32, %arg1: i32, %arg2: memref<1x4x256xf32, #tpu.memory_space<vmem>>, %arg3: memref<4x256xf32, #tpu.memory_space<vmem>>, %arg4: memref<1x4x256xf32, #tpu.memory_space<vmem>>) attributes {dimension_semantics = [#tpu.dimension_semantics<parallel>, #tpu.dimension_semantics<parallel>], iteration_bounds = array<i64: 1, 2>, scalar_prefetch = 0 : i64, scratch_operands = 0 : i64, tpu.core_type = #tpu.core_type<tc>, window_params = [{transform_indices = @transform_0, window_bounds = array<i64: 1, 4, 256>}, {transform_indices = @transform_1, window_bounds = array<i64: 4, 256>}, {transform_indices = @transform_2, window_bounds = array<i64: 1, 4, 256>}]} {
    %c0 = arith.constant 0 : index
    %c0_0 = arith.constant 0 : index
    %c0_1 = arith.constant 0 : index
    %0 = vector.load %arg2[%c0, %c0_0, %c0_1] : memref<1x4x256xf32, #tpu.memory_space<vmem>>, vector<1x4x256xf32>
    %1 = vector.shape_cast %0 : vector<1x4x256xf32> to vector<4x256xf32>
    %c0_2 = arith.constant 0 : index
    %c0_3 = arith.constant 0 : index
    %2 = vector.load %arg3[%c0_2, %c0_3] : memref<4x256xf32, #tpu.memory_space<vmem>>, vector<4x256xf32>
    %3 = arith.addf %1, %2 : vector<4x256xf32>
    %c0_4 = arith.constant 0 : index
    %c0_5 = arith.constant 0 : index
    %c0_6 = arith.constant 0 : index
    %4 = vector.load %arg4[%c0_4, %c0_5, %c0_6] : memref<1x4x256xf32, #tpu.memory_space<vmem>>, vector<1x4x256xf32>
    %5 = vector.shape_cast %4 : vector<1x4x256xf32> to vector<4x256xf32>
    %6 = vector.shape_cast %3 : vector<4x256xf32> to vector<1x4x256xf32>
    tpu.vector_store %arg4[%c0_4, %c0_5, %c0_6], %6 {strides = array<i32>} : memref<1x4x256xf32, #tpu.memory_space<vmem>>, vector<1x4x256xf32>,
    return
  }
  func.func @transform_0(%arg0: i32, %arg1: i32) -> (i32, i32, i32) {
    %c0_i32 = arith.constant 0 : i32
    %c0_i32_0 = arith.constant 0 : i32
    return %arg1, %c0_i32, %arg0 : i32, i32, i32
  }
  func.func @transform_1(%arg0: i32, %arg1: i32) -> (i32, i32) {
    %c0_i32 = arith.constant 0 : i32
    %c0_i32_0 = arith.constant 0 : i32
    return %c0_i32, %arg0 : i32, i32
  }
  func.func @transform_2(%arg0: i32, %arg1: i32) -> (i32, i32, i32) {
    %c0_i32 = arith.constant 0 : i32
    %c0_i32_0 = arith.constant 0 : i32
    return %arg1, %c0_i32, %arg0 : i32, i32, i32
  }
}

</mosaic_0001>

<llo_original>
// kernel: positional_encoding_2d.1
$region0: #{positional_encoding_2d.1}
  #allocation0 [shape = 'u32[]', space=smem, size = 0x4, offset = 0x4, fixed_abs, tag = 'smem constant byte address 0x4 - core index']
  #allocation1 [shape = 'u32[72,128]{1,0:T(1,128)}', space=vmem, size = 0x9000, scoped, tag = 'internal scratch']
  %s0 = inlined_call_operand.vmem [shape: f32[2,4,256], index: 0, kind: input, shape index: {}, may-alias: {0,2}]
  %s1 = inlined_call_operand.vmem [shape: f32[4,256], index: 1, kind: input, shape index: {}]
  %s2 = inlined_call_operand.vmem [shape: f32[2,4,256], index: 2, kind: output, shape index: {}, may-alias: {0,2}]
  %s3 = sld [smem:[#allocation0]]
  $region41: #{positional_encoding_2d.1} parent=0
    _
  %s5 = ssub.s32 1, %s3
  %s6 = scalar_select 0, %s5, %s3
  loop: start=0, step=1, limit=4
  $region2: #{positional_encoding_2d.1} parent=0 // loop_pre_header
    _
  $region3: #{positional_encoding_2d.1} parent=0 // loop_header
    %s8 = sphi 0, %s12
    %p9 = scmp.ge.s32.totalorder %s8, 4
    %s15 = sphi 0, %s27
    %s16 = sphi 0, %s23
    %s17 = sphi 0, %s15
    %s18 = sphi 0, %s16
    %s19 = sphi 0, %s17
    %s20 = sphi 0, %s18
    %s32 = sphi 0, %s34
    %s35 = sphi 0, %s32
    %s36 = sphi 0, %s35
    %s52 = sphi 0, %s36
    %s58 = sphi 0, %s60
    %s61 = sphi 0, %s58
    %s62 = sphi 0, %s61
    %s78 = sphi 0, %s62
    %s86 = sphi 0, %s88
    %s89 = sphi 0, %s86
    %s90 = sphi 0, %s89
    %s106 = sphi 0, %s90
  $region4: #{positional_encoding_2d.1} parent=0 // loop_header_branch
    %11 = sbr.rel (%p9) target = $region8
  $region5: #{positional_encoding_2d.1} parent=0 // loop_body
    %s13 = ssub.s32 %s8, 1
    %s14 = ssub.s32 %s8, 2
    %s21 = sadd.s32 1, %s16
    %p22 = scmp.ge.s32.totalorder %s21, 2
    %s23 = scalar_select %p22, 0, %s21
    %s24 = sadd.s32 1, %s15
    %s25 = scalar_select %p22, %s24, %s15
    %p26 = scmp.ge.s32.totalorder %s25, 1
    %s27 = scalar_select %p26, 0, %s25
    %s28 = ssub.s32 %s16, %s23
    %s29 = ssub.s32 %s15, %s27
    %s30 = sor.u32 %s28, %s29
    %p31 = scmp.eq.s32.totalorder %s30, 0
    %s33 = sadd.s32 %s32, 1
    %s34 = scalar_select %p31, %s32, %s33
    %p37 = pneg %p31
    %p38 = scmp.eq.s32.totalorder %s8, 1
    %p39 = por %p37, %p38
    %p40 = scmp.ne.s32.totalorder %s32, %s35
    %p41 = scmp.eq.s32.totalorder %s8, 0
    %p42 = por %p40, %p41
    %p43 = scmp.ne.s32.totalorder %s32, %s35
    %p44 = scmp.eq.s32.totalorder %s13, 1
    %p45 = por %p43, %p44
    %p46 = scmp.ne.s32.totalorder %s35, %s36
    %p47 = scmp.eq.s32.totalorder %s13, 0
    %p48 = por %p46, %p47
    %p49 = scmp.ne.s32.totalorder %s35, %s36
    %p50 = scmp.eq.s32.totalorder %s14, 1
    %p51 = por %p49, %p50
    %p53 = scmp.ne.s32.totalorder %s36, %s52
    %p54 = scmp.eq.s32.totalorder %s14, 0
    %p55 = por %p53, %p54
    %s56 = ssub.s32 %s15, %s27
    %p57 = scmp.eq.s32.totalorder %s56, 0
    %s59 = sadd.s32 %s58, 1
    %s60 = scalar_select %p57, %s58, %s59
    %p63 = pneg %p57
    %p64 = scmp.eq.s32.totalorder %s8, 1
    %p65 = por %p63, %p64
    %p66 = scmp.ne.s32.totalorder %s58, %s61
    %p67 = scmp.eq.s32.totalorder %s8, 0
    %p68 = por %p66, %p67
    %p69 = scmp.ne.s32.totalorder %s58, %s61
    %p70 = scmp.eq.s32.totalorder %s13, 1
    %p71 = por %p69, %p70
    %p72 = scmp.ne.s32.totalorder %s61, %s62
    %p73 = scmp.eq.s32.totalorder %s13, 0
    %p74 = por %p72, %p73
    %p75 = scmp.ne.s32.totalorder %s61, %s62
    %p76 = scmp.eq.s32.totalorder %s14, 1
    %p77 = por %p75, %p76
    %p79 = scmp.ne.s32.totalorder %s62, %s78
    %p80 = scmp.eq.s32.totalorder %s14, 0
    %p81 = por %p79, %p80
    %s82 = ssub.s32 %s16, %s23
    %s83 = ssub.s32 %s15, %s27
    %s84 = sor.u32 %s82, %s83
    %p85 = scmp.eq.s32.totalorder %s84, 0
    %s87 = sadd.s32 %s86, 1
    %s88 = scalar_select %p85, %s86, %s87
    %p91 = pneg %p85
    %p92 = scmp.eq.s32.totalorder %s8, 1
    %p93 = por %p91, %p92
    %p94 = scmp.ne.s32.totalorder %s86, %s89
    %p95 = scmp.eq.s32.totalorder %s8, 0
    %p96 = por %p94, %p95
    %p97 = scmp.ne.s32.totalorder %s86, %s89
    %p98 = scmp.eq.s32.totalorder %s13, 1
    %p99 = por %p97, %p98
    %p100 = scmp.ne.s32.totalorder %s89, %s90
    %p101 = scmp.eq.s32.totalorder %s13, 0
    %p102 = por %p100, %p101
    %p103 = scmp.ne.s32.totalorder %s89, %s90
    %p104 = scmp.eq.s32.totalorder %s14, 1
    %p105 = por %p103, %p104
    %p107 = scmp.ne.s32.totalorder %s90, %s106
    %p108 = scmp.eq.s32.totalorder %s14, 0
    %p109 = por %p107, %p108
    %p110 = scmp.le.s32.totalorder 1, %s8
    %p111 = scmp.lt.s32.totalorder %s8, 3
    %p112 = pnand %p110, %p111
    %p113 = pneg %p112
    // Predicated region
    $region9: #{positional_encoding_2d.1} parent=5 // pred_check
      _
    $region10: #{positional_encoding_2d.1} parent=5 // pred_check_branch
      %115 = sbr.rel (%p112) target = $region12
    $region11: #{positional_encoding_2d.1} parent=5 // pred_region
      %s116 = ssub.s32 %s8, 1
      // Predicated region
      $region13: #{positional_encoding_2d.1} parent=11 // pred_check
        %p117 = pneg %p74
      $region14: #{positional_encoding_2d.1} parent=11 // pred_check_branch
        %119 = sbr.rel (%p117) target = $region16
      $region15: #{positional_encoding_2d.1} parent=11 // pred_region
        %s120 = smul.u32 2, %s17
        %p121 = scmp.lt.s32.totalorder %s120, 1
        %s122 = scalar_select %p121, %s120, 1
        %s123 = smul.addr %s122, 4
        %s124 = scalar_lea.vmem %s1, %s123
        %s125 = smul.u32 2, %s17
      $region16: #{positional_encoding_2d.1} parent=11 // pred_fallthru
        _
    $region12: #{positional_encoding_2d.1} parent=5 // pred_fallthru
      _
    %p126 = scmp.lt.s32.totalorder %s8, 2
    // Predicated region
    $region17: #{positional_encoding_2d.1} parent=5 // pred_check
      %p127 = pneg %p126
    $region18: #{positional_encoding_2d.1} parent=5 // pred_check_branch
      %129 = sbr.rel (%p127) target = $region20
    $region19: #{positional_encoding_2d.1} parent=5 // pred_region
      // Predicated region
      $region21: #{positional_encoding_2d.1} parent=19 // pred_check
        %p130 = pneg %p42
      $region22: #{positional_encoding_2d.1} parent=19 // pred_check_branch
        %132 = sbr.rel (%p130) target = $region24
      $region23: #{positional_encoding_2d.1} parent=19 // pred_region
        %s133 = smul.u32 2, %s15
        %p134 = scmp.lt.s32.totalorder %s16, 1
        %s135 = scalar_select %p134, %s16, 1
        %p136 = scmp.lt.s32.totalorder %s133, 1
        %s137 = scalar_select %p136, %s133, 1
        %s138 = smul.addr %s135, 2
        %s139 = sadd.s32 %s137, %s138
        %s140 = smul.addr %s139, 4
        %s141 = scalar_lea.vmem %s0, %s140
        %s142 = smul.u32 2, %s15
      $region24: #{positional_encoding_2d.1} parent=19 // pred_fallthru
        _
    $region20: #{positional_encoding_2d.1} parent=5 // pred_fallthru
      _
    %p143 = scmp.le.s32.totalorder 1, %s8
    %p144 = scmp.lt.s32.totalorder %s8, 3
    %p145 = pnand %p143, %p144
    %p146 = pneg %p145
    // Predicated region
    $region25: #{positional_encoding_2d.1} parent=5 // pred_check
      _
    $region26: #{positional_encoding_2d.1} parent=5 // pred_check_branch
      %148 = sbr.rel (%p145) target = $region28
    $region27: #{positional_encoding_2d.1} parent=5 // pred_region
      %s149 = ssub.s32 %s8, 1
      %s150 = smul.u32 2, %s17
      %p151 = scmp.lt.s32.totalorder %s18, 1
      %s152 = scalar_select %p151, %s18, 1
      %p153 = scmp.lt.s32.totalorder %s150, 1
      %s154 = scalar_select %p153, %s150, 1
      %s155 = smul.addr %s152, 2
      %s156 = sadd.s32 %s154, %s155
      %s157 = smul.addr %s156, 4
      %s158 = scalar_lea.vmem %s0, %s157
      %p159 = pneg %p48
      %p160 = pneg %p45
      %s161 = smul.u32 2, %s17
      %p162 = scmp.lt.s32.totalorder %s161, 1
      %s163 = scalar_select %p162, %s161, 1
      %s164 = smul.addr %s163, 4
      %s165 = scalar_lea.vmem %s1, %s164
      %p166 = pneg %p74
      %p167 = pneg %p71
      %p168 = pneg %p102
      %p169 = pneg %p99
      %s170 = smul.u32 2, %s17
      %p171 = scmp.lt.s32.totalorder %s18, 1
      %s172 = scalar_select %p171, %s18, 1
      %p173 = scmp.lt.s32.totalorder %s170, 1
      %s174 = scalar_select %p173, %s170, 1
      %s175 = smul.addr %s172, 2
      %s176 = sadd.s32 %s174, %s175
      %s177 = smul.addr %s176, 4
      %s178 = scalar_lea.vmem %s2, %s177
      %s179 = smul.u32 2, %s17
      %p180 = scmp.lt.s32.totalorder %s18, 1
      %s181 = scalar_select %p180, %s18, 1
      %p182 = scmp.lt.s32.totalorder %s179, 1
      %s183 = scalar_select %p182, %s179, 1
      %s184 = smul.addr %s181, 2
      %s185 = sadd.s32 %s183, %s184
      %s186 = smul.addr %s185, 4
      %s187 = scalar_lea.vmem %s0, %s186
      %s188 = smul.u32 2, %s17
      %s189 = smul.u32 2, %s17
      %p190 = scmp.lt.s32.totalorder %s189, 1
      %s191 = scalar_select %p190, %s189, 1
      %s192 = smul.addr %s191, 4
      %s193 = scalar_lea.vmem %s1, %s192
      %s194 = smul.u32 2, %s17
      %s195 = smul.u32 2, %s17
      %p196 = scmp.lt.s32.totalorder %s18, 1
      %s197 = scalar_select %p196, %s18, 1
      %p198 = scmp.lt.s32.totalorder %s195, 1
      %s199 = scalar_select %p198, %s195, 1
      %s200 = smul.addr %s197, 2
      %s201 = sadd.s32 %s199, %s200
      %s202 = smul.addr %s201, 4
      %s203 = scalar_lea.vmem %s2, %s202
      %s204 = smul.u32 2, %s17
      %v205 = vld [vmem:[%s187] sm:$0xff]
      %v206 = vld [vmem:[%s193] sm:$0xff]
      %v207 = vadd.f32 %v205, %v206
      %208 = vst [vmem:[%s203] sm:$0xff] %v207
      %s209 = smul.u32 2, %s17
      %p210 = scmp.lt.s32.totalorder %s18, 1
      %s211 = scalar_select %p210, %s18, 1
      %p212 = scmp.lt.s32.totalorder %s209, 1
      %s213 = scalar_select %p212, %s209, 1
      %s214 = smul.addr %s211, 2
      %s215 = sadd.s32 %s213, %s214
      %s216 = smul.addr %s215, 4
      %s217 = scalar_lea.vmem %s2, %s216
      // Predicated region
      $region29: #{positional_encoding_2d.1} parent=27 // pred_check
        %p218 = pneg %p99
      $region30: #{positional_encoding_2d.1} parent=27 // pred_check_branch
        %220 = sbr.rel (%p218) target = $region32
      $region31: #{positional_encoding_2d.1} parent=27 // pred_region
        %s221 = smul.u32 2, %s17
      $region32: #{positional_encoding_2d.1} parent=27 // pred_fallthru
        _
    $region28: #{positional_encoding_2d.1} parent=5 // pred_fallthru
      _
    %p222 = scmp.le.s32.totalorder 2, %s8
    // Predicated region
    $region33: #{positional_encoding_2d.1} parent=5 // pred_check
      %p223 = pneg %p222
    $region34: #{positional_encoding_2d.1} parent=5 // pred_check_branch
      %225 = sbr.rel (%p223) target = $region36
    $region35: #{positional_encoding_2d.1} parent=5 // pred_region
      %s226 = ssub.s32 %s8, 2
      // Predicated region
      $region37: #{positional_encoding_2d.1} parent=35 // pred_check
        %p227 = pneg %p105
      $region38: #{positional_encoding_2d.1} parent=35 // pred_check_branch
        %229 = sbr.rel (%p227) target = $region40
      $region39: #{positional_encoding_2d.1} parent=35 // pred_region
        %s230 = smul.u32 2, %s19
        %p231 = scmp.lt.s32.totalorder %s20, 1
        %s232 = scalar_select %p231, %s20, 1
        %p233 = scmp.lt.s32.totalorder %s230, 1
        %s234 = scalar_select %p233, %s230, 1
        %s235 = smul.addr %s232, 2
        %s236 = sadd.s32 %s234, %s235
        %s237 = smul.addr %s236, 4
        %s238 = scalar_lea.vmem %s2, %s237
      $region40: #{positional_encoding_2d.1} parent=35 // pred_fallthru
        _
    $region36: #{positional_encoding_2d.1} parent=5 // pred_fallthru
      _
  $region6: #{positional_encoding_2d.1} parent=0 // loop_footer
    %s12 = sadd.s32 1, %s8
  $region7: #{positional_encoding_2d.1} parent=0 // loop_footer_branch
    %7 = sbr.rel target = $region3
  $region8: #{positional_encoding_2d.1} parent=0 // loop_exit
    _

</llo_original>
